<compile_context>
chip_gen: v7x
topology: tpu7x:2x2x1
jax: 0.10.0
libtpu: 0.0.40
codegen_flags: <defaults>
</compile_context>

<pallas_src>
import jax
import jax.numpy as jnp
from jax.experimental import pallas as pl
from jax.experimental.pallas import tpu as pltpu


def switcher_kernel(x_ref, w_ref, b_ref, o_ref):
    # logits = x @ W (+ bias); W pre-transposed to (F, S).  bf16 operands, f32 acc.
    logits = jnp.dot(x_ref[...], w_ref[...],
                     preferred_element_type=jnp.float32) + b_ref[...]
    # Numerically-stable softmax over the last dim (== torch dim=1 for 2-D input).
    m = jnp.max(logits, axis=-1, keepdims=True)
    e = jnp.exp(logits - m)
    denom = jnp.sum(e, axis=-1, keepdims=True)
    o_ref[...] = (e / denom).astype(o_ref.dtype)   # exact divide: rows sum to 1


def _batch_tile(n, block_n):
    """Pick the batch tile: full extent for tiny N, otherwise a multiple-of-8
    tile that yields >= 2 grid steps (so v7x megacore can split the batch)."""
    if n <= 8:
        return n                              # single full-extent block (always legal)
    half = ((pl.cdiv(n, 2) + 7) // 8) * 8     # ceil(N/2) rounded up to 8
    return min(block_n, half)


def switcher_forward(x_nchw, w, b, *, block_n=2048):
    """x_nchw: (N, 3, H, W) f32; w: (S, F) PyTorch-layout Linear weight; b: (S,)."""
    n = x_nchw.shape[0]
    s, f = w.shape
    x_flat = x_nchw.reshape(n, -1)            # == torch .view(N, -1), row-major
    assert x_flat.shape[1] == f, (x_flat.shape, w.shape)

    # bf16 streaming for the big operands; bias / accumulation / softmax stay f32.
    x_bf16 = x_flat.astype(jnp.bfloat16)
    w_t = jnp.transpose(w).astype(jnp.bfloat16)   # one-time (F, S) layout
    b2 = b.reshape(1, s).astype(jnp.float32)

    tn = _batch_tile(n, block_n)
    grid = (pl.cdiv(n, tn),)

    cost = pl.CostEstimate(
        flops=2 * n * f * s,
        transcendentals=n * s,
        bytes_accessed=x_bf16.size * 2 + w_t.size * 2 + b2.size * 4 + n * s * 4,
    )

    return pl.pallas_call(
        switcher_kernel,
        out_shape=jax.ShapeDtypeStruct((n, s), jnp.float32),
        grid=grid,
        in_specs=[
            pl.BlockSpec((tn, f), lambda i: (i, 0)),   # x: streamed over batch
            pl.BlockSpec((f, s), lambda i: (0, 0)),    # weight: resident, (F, S)
            pl.BlockSpec((1, s), lambda i: (0, 0)),    # bias: resident
        ],
        out_specs=pl.BlockSpec((tn, s), lambda i: (i, 0)),
        compiler_params=pltpu.CompilerParams(
            dimension_semantics=("parallel",),          # shard batch across TCs (v7x)
        ),
        cost_estimate=cost,
    )(x_bf16, w_t, b2)


if __name__ == "__main__":
    # Module config: channel=4, num_switches=4
    # Linear in_features = channel * 192 = 768 = 3 * 16 * 16  -> input (N, 3, 16, 16)
    channel = 4
    num_switches = 4
    N, C, H, W = 2, 3, 16, 16
    F = channel * 192
    assert C * H * W == F

    key = jax.random.PRNGKey(0)
    kx, kw, kb = jax.random.split(key, 3)

    x = jax.random.normal(kx, (N, C, H, W), dtype=jnp.float32)

    # Deterministic Linear params (PyTorch-style uniform(-1/sqrt(fan_in), +1/sqrt(fan_in)))
    bound = 1.0 / (F ** 0.5)
    linear_w = jax.random.uniform(kw, (num_switches, F), jnp.float32, -bound, bound)
    linear_b = jax.random.uniform(kb, (num_switches,), jnp.float32, -bound, bound)

    # TODO(synk): ConvBasic (Conv2d+BN+ReLU) is not computed — its output is
    # discarded by the reference forward (only .size(0), i.e. the batch, is used).

    out = jax.block_until_ready(switcher_forward(x, linear_w, linear_b))
    assert out.shape == (N, num_switches)

    # Tight check against a reference using the same bf16-rounded operands.
    xb = x.reshape(N, -1).astype(jnp.bfloat16).astype(jnp.float32)
    wb = linear_w.astype(jnp.bfloat16).astype(jnp.float32)
    ref_bf16 = jax.nn.softmax(xb @ wb.T + linear_b, axis=-1)
    assert jnp.allclose(out, ref_bf16, atol=1e-4), (out, ref_bf16)

    # Sanity check against the full-f32 PyTorch numerics (bf16-streaming error budget).
    ref_f32 = jax.nn.softmax(x.reshape(N, -1) @ linear_w.T + linear_b, axis=-1)
    assert jnp.allclose(out, ref_f32, atol=1e-2), (out, ref_f32)

    # Probabilities must sum to 1 (exact divide in-kernel).
    assert jnp.allclose(jnp.sum(out, axis=-1), 1.0, atol=1e-4)

    print("KERNEL_OK")
</pallas_src>

<mosaic_0001>
module attributes {stable_mosaic.version = 11 : i64} {
  func.func @switcher_kernel(%arg0: i32, %arg1: memref<2x768xbf16, #tpu.memory_space<vmem>>, %arg2: memref<768x4xbf16, #tpu.memory_space<vmem>>, %arg3: memref<1x4xf32, #tpu.memory_space<vmem>>, %arg4: memref<2x4xf32, #tpu.memory_space<vmem>>) attributes {dimension_semantics = [#tpu.dimension_semantics<parallel>], iteration_bounds = array<i64: 1>, scalar_prefetch = 0 : i64, scratch_operands = 0 : i64, tpu.core_type = #tpu.core_type<tc>, window_params = [{transform_indices = @transform_0, window_bounds = array<i64: 2, 768>}, {pipeline_mode = #tpu.pipeline_mode<synchronous>, transform_indices = @transform_1, window_bounds = array<i64: 768, 4>}, {pipeline_mode = #tpu.pipeline_mode<synchronous>, transform_indices = @transform_2, window_bounds = array<i64: 1, 4>}, {transform_indices = @transform_3, window_bounds = array<i64: 2, 4>}]} {
    %c0 = arith.constant 0 : index
    %c0_0 = arith.constant 0 : index
    %0 = vector.load %arg1[%c0, %c0_0] : memref<2x768xbf16, #tpu.memory_space<vmem>>, vector<2x768xbf16>
    %c0_1 = arith.constant 0 : index
    %c0_2 = arith.constant 0 : index
    %1 = vector.load %arg2[%c0_1, %c0_2] : memref<768x4xbf16, #tpu.memory_space<vmem>>, vector<768x4xbf16>
    %cst = arith.constant dense<0.000000e+00> : vector<2x4xf32>
    %2 = tpu.matmul %0, %1, %cst {dimension_numbers = #tpu.dot_dimension_numbers<[1], [0], [0], [1], [0, 0, 1, 1], [], []>} : vector<2x768xbf16>, vector<768x4xbf16>, vector<2x4xf32> -> vector<2x4xf32>
    %c0_3 = arith.constant 0 : index
    %c0_4 = arith.constant 0 : index
    %3 = vector.load %arg3[%c0_3, %c0_4] : memref<1x4xf32, #tpu.memory_space<vmem>>, vector<1x4xf32>
    %4 = vector.broadcast %3 : vector<1x4xf32> to vector<2x4xf32>
    %5 = arith.addf %2, %4 : vector<2x4xf32>
    %cst_5 = arith.constant dense<0xFF800000> : vector<2xf32>
    %6 = vector.multi_reduction <maximumf>, %5, %cst_5 [1] : vector<2x4xf32> to vector<2xf32>
    %7 = vector.shape_cast %6 : vector<2xf32> to vector<2x1xf32>
    %8 = vector.broadcast %7 : vector<2x1xf32> to vector<2x4xf32>
    %9 = arith.subf %5, %8 : vector<2x4xf32>
    %10 = math.exp %9 : vector<2x4xf32>
    %cst_6 = arith.constant dense<0.000000e+00> : vector<2xf32>
    %11 = vector.multi_reduction <add>, %10, %cst_6 [1] : vector<2x4xf32> to vector<2xf32>
    %12 = vector.shape_cast %11 : vector<2xf32> to vector<2x1xf32>
    %13 = vector.broadcast %12 : vector<2x1xf32> to vector<2x4xf32>
    %14 = arith.divf %10, %13 : vector<2x4xf32>
    %c0_7 = arith.constant 0 : index
    %c0_8 = arith.constant 0 : index
    %15 = vector.load %arg4[%c0_7, %c0_8] : memref<2x4xf32, #tpu.memory_space<vmem>>, vector<2x4xf32>
    tpu.vector_store %arg4[%c0_7, %c0_8], %14 {strides = array<i32>} : memref<2x4xf32, #tpu.memory_space<vmem>>, vector<2x4xf32>,
    return
  }
  func.func @transform_0(%arg0: i32) -> (i32, i32) {
    %c0_i32 = arith.constant 0 : i32
    %c0_i32_0 = arith.constant 0 : i32
    return %arg0, %c0_i32 : i32, i32
  }
  func.func @transform_1(%arg0: i32) -> (i32, i32) {
    %c0_i32 = arith.constant 0 : i32
    %c0_i32_0 = arith.constant 0 : i32
    %c0_i32_1 = arith.constant 0 : i32
    return %c0_i32, %c0_i32_0 : i32, i32
  }
  func.func @transform_2(%arg0: i32) -> (i32, i32) {
    %c0_i32 = arith.constant 0 : i32
    %c0_i32_0 = arith.constant 0 : i32
    %c0_i32_1 = arith.constant 0 : i32
    return %c0_i32, %c0_i32_0 : i32, i32
  }
  func.func @transform_3(%arg0: i32) -> (i32, i32) {
    %c0_i32 = arith.constant 0 : i32
    %c0_i32_0 = arith.constant 0 : i32
    return %arg0, %c0_i32 : i32, i32
  }
}

</mosaic_0001>

<llo_original>
// kernel: tpu_custom_call.1
$region0: #{tpu_custom_call.1}
  #allocation0 [shape = 'u32[]', space=smem, size = 0x4, offset = 0x4, fixed_abs, tag = 'smem constant byte address 0x4 - core index']
  #allocation1 [shape = 'u32[144,128]{1,0:T(1,128)}', space=vmem, size = 0x12000, scoped, tag = 'internal scratch']
  %s0 = inlined_call_operand.vmem [shape: bf16[2,768], index: 0, kind: input, shape index: {}]
  %s1 = inlined_call_operand.vmem [shape: bf16[768,4], index: 1, kind: input, shape index: {}]
  %s2 = inlined_call_operand.vmem [shape: f32[1,4], index: 2, kind: input, shape index: {}]
  %s3 = inlined_call_operand.hbm [shape: f32[2,4], index: 3, kind: output, shape index: {}]
  %s4 = sld [smem:[#allocation0]]
  $region22: #{tpu_custom_call.1} parent=0
    _
  %s6 = ssub.s32 1, %s4
  %s7 = scalar_select 0, %s6, %s4
  $region1: #{tpu_custom_call.1} parent=0
    #allocation2 [shape = 'u8[1024]{0}', space=vmem, size = 0x400, scoped, tag = 'output window, operand 0, single buffered']
    #allocation3 [shape = 's32[1]{0}', space=sflag, size = 0x4, scoped, tag = 'scoped memory for tpu_custom_call.1']
    %8 = vsyncpa [#allocation3], 0
    // Predicated region
    $region2: #{tpu_custom_call.1} parent=1 // pred_check
      _
    $region3: #{tpu_custom_call.1} parent=1 // pred_check_branch
      %10 = sbr.rel (0) target = $region5
    $region4: #{tpu_custom_call.1} parent=1 // pred_region
      _
    $region5: #{tpu_custom_call.1} parent=1 // pred_fallthru
      _
    // Predicated region
    $region6: #{tpu_custom_call.1} parent=1 // pred_check
      _
    $region7: #{tpu_custom_call.1} parent=1 // pred_check_branch
      %12 = sbr.rel (0) target = $region9
    $region8: #{tpu_custom_call.1} parent=1 // pred_region
      _
    $region9: #{tpu_custom_call.1} parent=1 // pred_fallthru
      _
    // Predicated region
    $region10: #{tpu_custom_call.1} parent=1 // pred_check
      _
    $region11: #{tpu_custom_call.1} parent=1 // pred_check_branch
      %14 = sbr.rel (0) target = $region13
    $region12: #{tpu_custom_call.1} parent=1 // pred_region
      _
    $region13: #{tpu_custom_call.1} parent=1 // pred_fallthru
      _
    %v16 = vld [vmem:[%s0] sm:$0x3f]
    %v17 = vld [vmem:[%s1] sm:$0xf]
    %v18 = vld [vmem:[%s1 + $0x4] sm:$0xf]
    %v19 = vld [vmem:[%s1 + $0x8] sm:$0xf]
    %v20 = vld [vmem:[%s1 + $0xc] sm:$0xf]
    %v21 = vld [vmem:[%s1 + $0x10] sm:$0xf]
    %v22 = vld [vmem:[%s1 + $0x14] sm:$0xf]
    %v23 = vld [vmem:[%s1 + $0x18] sm:$0xf]
    %v24 = vld [vmem:[%s1 + $0x1c] sm:$0xf]
    %v25 = vld [vmem:[%s1 + $0x20] sm:$0xf]
    %v26 = vld [vmem:[%s1 + $0x24] sm:$0xf]
    %v27 = vld [vmem:[%s1 + $0x28] sm:$0xf]
    %v28 = vld [vmem:[%s1 + $0x2c] sm:$0xf]
    %v29 = vld [vmem:[%s1 + $0x30] sm:$0xf]
    %v30 = vld [vmem:[%s1 + $0x34] sm:$0xf]
    %v31 = vld [vmem:[%s1 + $0x38] sm:$0xf]
    %v32 = vld [vmem:[%s1 + $0x3c] sm:$0xf]
    %v33 = vld [vmem:[%s1 + $0x40] sm:$0xf]
    %v34 = vld [vmem:[%s1 + $0x44] sm:$0xf]
    %v35 = vld [vmem:[%s1 + $0x48] sm:$0xf]
    %v36 = vld [vmem:[%s1 + $0x4c] sm:$0xf]
    %v37 = vld [vmem:[%s1 + $0x50] sm:$0xf]
    %v38 = vld [vmem:[%s1 + $0x54] sm:$0xf]
    %v39 = vld [vmem:[%s1 + $0x58] sm:$0xf]
    %v40 = vld [vmem:[%s1 + $0x5c] sm:$0xf]
    %v41 = vld [vmem:[%s1 + $0x60] sm:$0xf]
    %v42 = vld [vmem:[%s1 + $0x64] sm:$0xf]
    %v43 = vld [vmem:[%s1 + $0x68] sm:$0xf]
    %v44 = vld [vmem:[%s1 + $0x6c] sm:$0xf]
    %v45 = vld [vmem:[%s1 + $0x70] sm:$0xf]
    %v46 = vld [vmem:[%s1 + $0x74] sm:$0xf]
    %v47 = vld [vmem:[%s1 + $0x78] sm:$0xf]
    %v48 = vld [vmem:[%s1 + $0x7c] sm:$0xf]
    %v49 = vld [vmem:[%s1 + $0x80] sm:$0xf]
    %v50 = vld [vmem:[%s1 + $0x84] sm:$0xf]
    %v51 = vld [vmem:[%s1 + $0x88] sm:$0xf]
    %v52 = vld [vmem:[%s1 + $0x8c] sm:$0xf]
    %v53 = vld [vmem:[%s1 + $0x90] sm:$0xf]
    %v54 = vld [vmem:[%s1 + $0x94] sm:$0xf]
    %v55 = vld [vmem:[%s1 + $0x98] sm:$0xf]
    %v56 = vld [vmem:[%s1 + $0x9c] sm:$0xf]
    %v57 = vld [vmem:[%s1 + $0xa0] sm:$0xf]
    %v58 = vld [vmem:[%s1 + $0xa4] sm:$0xf]
    %v59 = vld [vmem:[%s1 + $0xa8] sm:$0xf]
    %v60 = vld [vmem:[%s1 + $0xac] sm:$0xf]
    %v61 = vld [vmem:[%s1 + $0xb0] sm:$0xf]
    %v62 = vld [vmem:[%s1 + $0xb4] sm:$0xf]
    %v63 = vld [vmem:[%s1 + $0xb8] sm:$0xf]
    %v64 = vld [vmem:[%s1 + $0xbc] sm:$0xf]
    %v65 = vld [vmem:[%s1 + $0xc0] sm:$0xf]
    %v66 = vld [vmem:[%s1 + $0xc4] sm:$0xf]
    %v67 = vld [vmem:[%s1 + $0xc8] sm:$0xf]
    %v68 = vld [vmem:[%s1 + $0xcc] sm:$0xf]
    %v69 = vld [vmem:[%s1 + $0xd0] sm:$0xf]
    %v70 = vld [vmem:[%s1 + $0xd4] sm:$0xf]
    %v71 = vld [vmem:[%s1 + $0xd8] sm:$0xf]
    %v72 = vld [vmem:[%s1 + $0xdc] sm:$0xf]
    %v73 = vld [vmem:[%s1 + $0xe0] sm:$0xf]
    %v74 = vld [vmem:[%s1 + $0xe4] sm:$0xf]
    %v75 = vld [vmem:[%s1 + $0xe8] sm:$0xf]
    %v76 = vld [vmem:[%s1 + $0xec] sm:$0xf]
    %v77 = vld [vmem:[%s1 + $0xf0] sm:$0xf]
    %v78 = vld [vmem:[%s1 + $0xf4] sm:$0xf]
    %v79 = vld [vmem:[%s1 + $0xf8] sm:$0xf]
    %v80 = vld [vmem:[%s1 + $0xfc] sm:$0xf]
    %v81 = vld [vmem:[%s1 + $0x100] sm:$0xf]
    %v82 = vld [vmem:[%s1 + $0x104] sm:$0xf]
    %v83 = vld [vmem:[%s1 + $0x108] sm:$0xf]
    %v84 = vld [vmem:[%s1 + $0x10c] sm:$0xf]
    %v85 = vld [vmem:[%s1 + $0x110] sm:$0xf]
    %v86 = vld [vmem:[%s1 + $0x114] sm:$0xf]
    %v87 = vld [vmem:[%s1 + $0x118] sm:$0xf]
    %v88 = vld [vmem:[%s1 + $0x11c] sm:$0xf]
    %v89 = vld [vmem:[%s1 + $0x120] sm:$0xf]
    %v90 = vld [vmem:[%s1 + $0x124] sm:$0xf]
    %v91 = vld [vmem:[%s1 + $0x128] sm:$0xf]
    %v92 = vld [vmem:[%s1 + $0x12c] sm:$0xf]
    %v93 = vld [vmem:[%s1 + $0x130] sm:$0xf]
    %v94 = vld [vmem:[%s1 + $0x134] sm:$0xf]
    %v95 = vld [vmem:[%s1 + $0x138] sm:$0xf]
    %v96 = vld [vmem:[%s1 + $0x13c] sm:$0xf]
    %v97 = vld [vmem:[%s1 + $0x140] sm:$0xf]
    %v98 = vld [vmem:[%s1 + $0x144] sm:$0xf]
    %v99 = vld [vmem:[%s1 + $0x148] sm:$0xf]
    %v100 = vld [vmem:[%s1 + $0x14c] sm:$0xf]
    %v101 = vld [vmem:[%s1 + $0x150] sm:$0xf]
    %v102 = vld [vmem:[%s1 + $0x154] sm:$0xf]
    %v103 = vld [vmem:[%s1 + $0x158] sm:$0xf]
    %v104 = vld [vmem:[%s1 + $0x15c] sm:$0xf]
    %v105 = vld [vmem:[%s1 + $0x160] sm:$0xf]
    %v106 = vld [vmem:[%s1 + $0x164] sm:$0xf]
    %v107 = vld [vmem:[%s1 + $0x168] sm:$0xf]
    %v108 = vld [vmem:[%s1 + $0x16c] sm:$0xf]
    %v109 = vld [vmem:[%s1 + $0x170] sm:$0xf]
    %v110 = vld [vmem:[%s1 + $0x174] sm:$0xf]
    %v111 = vld [vmem:[%s1 + $0x178] sm:$0xf]
    %v112 = vld [vmem:[%s1 + $0x17c] sm:$0xf]
    %v113 = vld [vmem:[%s2] sm:$0x1]
    %v115 = vlaneseq
    %v116 = vshrl.u32 %v115, 7
    %v117 = vsub.s32 0, %v116
    %v118 = vrot.slane %v113, %v117
    %v121 = vcombine.high %v16, %v16
    %v123 = vunpack.c.l.s4 1966171168
    %v124 = vunpack.c.0.s8 %v123
    %v125 = vlaneseq
    %v126 = vshrl.u32 %v125, 7
    %v127 = vsub.s32 %v124, %v126
    %v128 = vrot.slane %v16, %v127
    %v130 = vunpack.c.l.s4 1966171168
    %v131 = vunpack.c.0.s8 %v130
    %v132 = vlaneseq
    %v133 = vshrl.u32 %v132, 7
    %v134 = vsub.s32 %v131, %v133
    %v135 = vrot.slane %v121, %v134
    %v136 = vcombine.high %v128, %v128
    %v137 = vcombine.high %v135, %v135
    %v139 = vunpack.c.l.s4 1966171168
    %v140 = vunpack.c.0.s8 %v139
    %v141 = vlaneseq
    %v142 = vshrl.u32 %v141, 7
    %v143 = vsub.s32 %v140, %v142
    %v144 = vrot.slane %v128, %v143
    %v146 = vunpack.c.l.s4 1966171168
    %v147 = vunpack.c.0.s8 %v146
    %v148 = vlaneseq
    %v149 = vshrl.u32 %v148, 7
    %v150 = vsub.s32 %v147, %v149
    %v151 = vrot.slane %v135, %v150
    %v153 = vunpack.c.l.s4 1966171168
    %v154 = vunpack.c.0.s8 %v153
    %v155 = vlaneseq
    %v156 = vshrl.u32 %v155, 7
    %v157 = vsub.s32 %v154, %v156
    %v158 = vrot.slane %v136, %v157
    %v160 = vunpack.c.l.s4 1966171168
    %v161 = vunpack.c.0.s8 %v160
    %v162 = vlaneseq
    %v163 = vshrl.u32 %v162, 7
    %v164 = vsub.s32 %v161, %v163
    %v165 = vrot.slane %v137, %v164
    %v166 = vcombine.high %v144, %v144
    %v167 = vcombine.high %v158, %v158
    %v270 = vunpack.c.l.b16 %v17
    %v271 = vunpack.c.l.b16 %v18
    %v272 = vunpack.c.l.b16 %v19
    %v273 = vunpack.c.l.b16 %v20
    %v274 = vunpack.c.l.b16 %v21
    %v275 = vunpack.c.l.b16 %v22
    %v276 = vunpack.c.l.b16 %v23
    %v277 = vunpack.c.l.b16 %v24
    %v278 = vunpack.c.l.b16 %v25
    %v279 = vunpack.c.l.b16 %v26
    %v280 = vunpack.c.l.b16 %v27
    %v281 = vunpack.c.l.b16 %v28
    %v282 = vunpack.c.l.b16 %v29
    %v283 = vunpack.c.l.b16 %v30
    %v284 = vunpack.c.l.b16 %v31
    %v285 = vunpack.c.l.b16 %v32
    %v286 = vunpack.c.l.b16 %v33
    %v287 = vunpack.c.l.b16 %v34
    %v288 = vunpack.c.l.b16 %v35
    %v289 = vunpack.c.l.b16 %v36
    %v290 = vunpack.c.l.b16 %v37
    %v291 = vunpack.c.l.b16 %v38
    %v292 = vunpack.c.l.b16 %v39
    %v293 = vunpack.c.l.b16 %v40
    %v294 = vunpack.c.l.b16 %v41
    %v295 = vunpack.c.l.b16 %v42
    %v296 = vunpack.c.l.b16 %v43
    %v297 = vunpack.c.l.b16 %v44
    %v298 = vunpack.c.l.b16 %v45
    %v299 = vunpack.c.l.b16 %v46
    %v300 = vunpack.c.l.b16 %v47
    %v301 = vunpack.c.l.b16 %v48
    %v302 = vunpack.c.l.b16 %v49
    %v303 = vunpack.c.l.b16 %v50
    %v304 = vunpack.c.l.b16 %v51
    %v305 = vunpack.c.l.b16 %v52
    %v306 = vunpack.c.l.b16 %v53
    %v307 = vunpack.c.l.b16 %v54
    %v308 = vunpack.c.l.b16 %v55
    %v309 = vunpack.c.l.b16 %v56
    %v310 = vunpack.c.l.b16 %v57
    %v311 = vunpack.c.l.b16 %v58
    %v312 = vunpack.c.l.b16 %v59
    %v313 = vunpack.c.l.b16 %v60
    %v314 = vunpack.c.l.b16 %v61
    %v315 = vunpack.c.l.b16 %v62
    %v316 = vunpack.c.l.b16 %v63
    %v317 = vunpack.c.l.b16 %v64
    %v318 = vunpack.c.l.b16 %v65
    %v319 = vunpack.c.l.b16 %v66
    %v320 = vunpack.c.l.b16 %v67
    %v321 = vunpack.c.l.b16 %v68
    %v322 = vunpack.c.l.b16 %v69
    %v323 = vunpack.c.l.b16 %v70
    %v324 = vunpack.c.l.b16 %v71
    %v325 = vunpack.c.l.b16 %v72
    %v326 = vunpack.c.l.b16 %v73
    %v327 = vunpack.c.l.b16 %v74
    %v328 = vunpack.c.l.b16 %v75
    %v329 = vunpack.c.l.b16 %v76
    %v330 = vunpack.c.l.b16 %v77
    %v331 = vunpack.c.l.b16 %v78
    %v332 = vunpack.c.l.b16 %v79
    %v333 = vunpack.c.l.b16 %v80
    %v334 = vunpack.c.l.b16 %v81
    %v335 = vunpack.c.l.b16 %v82
    %v336 = vunpack.c.l.b16 %v83
    %v337 = vunpack.c.l.b16 %v84
    %v338 = vunpack.c.l.b16 %v85
    %v339 = vunpack.c.l.b16 %v86
    %v340 = vunpack.c.l.b16 %v87
    %v341 = vunpack.c.l.b16 %v88
    %v342 = vunpack.c.l.b16 %v89
    %v343 = vunpack.c.l.b16 %v90
    %v344 = vunpack.c.l.b16 %v91
    %v345 = vunpack.c.l.b16 %v92
    %v346 = vunpack.c.l.b16 %v93
    %v347 = vunpack.c.l.b16 %v94
    %v348 = vunpack.c.l.b16 %v95
    %v349 = vunpack.c.l.b16 %v96
    %v350 = vunpack.c.l.b16 %v97
    %v351 = vunpack.c.l.b16 %v98
    %v352 = vunpack.c.l.b16 %v99
    %v353 = vunpack.c.l.b16 %v100
    %v354 = vunpack.c.l.b16 %v101
    %v355 = vunpack.c.l.b16 %v102
    %v356 = vunpack.c.l.b16 %v103
    %v357 = vunpack.c.l.b16 %v104
    %v358 = vunpack.c.l.b16 %v105
    %v359 = vunpack.c.l.b16 %v106
    %v360 = vunpack.c.l.b16 %v107
    %v361 = vunpack.c.l.b16 %v108
    %v362 = vunpack.c.l.b16 %v109
    %v363 = vunpack.c.l.b16 %v110
    %v364 = vunpack.c.l.b16 %v111
    %v365 = vunpack.c.l.b16 %v112
    %v366 = vpack.c.b16 %v271, %v270
    %v367 = vpack.c.b16 %v273, %v272
    %v368 = vpack.c.b16 %v275, %v274
    %v369 = vpack.c.b16 %v277, %v276
    %v370 = vpack.c.b16 %v279, %v278
    %v371 = vpack.c.b16 %v281, %v280
    %v372 = vpack.c.b16 %v283, %v282
    %v373 = vpack.c.b16 %v285, %v284
    %v374 = vpack.c.b16 %v287, %v286
    %v375 = vpack.c.b16 %v289, %v288
    %v376 = vpack.c.b16 %v291, %v290
    %v377 = vpack.c.b16 %v293, %v292
    %v378 = vpack.c.b16 %v295, %v294
    %v379 = vpack.c.b16 %v297, %v296
    %v380 = vpack.c.b16 %v299, %v298
    %v381 = vpack.c.b16 %v301, %v300
    %v382 = vpack.c.b16 %v303, %v302
    %v383 = vpack.c.b16 %v305, %v304
    %v384 = vpack.c.b16 %v307, %v306
    %v385 = vpack.c.b16 %v309, %v308
    %v386 = vpack.c.b16 %v311, %v310
    %v387 = vpack.c.b16 %v313, %v312
    %v388 = vpack.c.b16 %v315, %v314
    %v389 = vpack.c.b16 %v317, %v316
    %v390 = vpack.c.b16 %v319, %v318
    %v391 = vpack.c.b16 %v321, %v320
    %v392 = vpack.c.b16 %v323, %v322
    %v393 = vpack.c.b16 %v325, %v324
    %v394 = vpack.c.b16 %v327, %v326
    %v395 = vpack.c.b16 %v329, %v328
    %v396 = vpack.c.b16 %v331, %v330
    %v397 = vpack.c.b16 %v333, %v332
    %v398 = vpack.c.b16 %v335, %v334
    %v399 = vpack.c.b16 %v337, %v336
    %v400 = vpack.c.b16 %v339, %v338
    %v401 = vpack.c.b16 %v341, %v340
    %v402 = vpack.c.b16 %v343, %v342
    %v403 = vpack.c.b16 %v345, %v344
    %v404 = vpack.c.b16 %v347, %v346
    %v405 = vpack.c.b16 %v349, %v348
    %v406 = vpack.c.b16 %v351, %v350
    %v407 = vpack.c.b16 %v353, %v352
    %v408 = vpack.c.b16 %v355, %v354
    %v409 = vpack.c.b16 %v357, %v356
    %v410 = vpack.c.b16 %v359, %v358
    %v411 = vpack.c.b16 %v361, %v360
    %v412 = vpack.c.b16 %v363, %v362
    %v413 = vpack.c.b16 %v365, %v364
    %462 = vmatprep.subr.bf16.mxu0 0
    %463 = vmatpush1.bf16.msra.mxu0 %v366
    %464 = vmatprep.subr.bf16.mxu0 0
    %465 = vmatpush1.bf16.msra.mxu0 %v367
    %466 = vmatprep.subr.bf16.mxu0 0
    %467 = vmatpush1.bf16.msra.mxu0 %v368
    %468 = vmatprep.subr.bf16.mxu0 0
    %469 = vmatpush1.bf16.msra.mxu0 %v369
    %470 = vmatprep.subr.bf16.mxu0 0
    %471 = vmatpush1.bf16.msra.mxu0 %v370
    %472 = vmatprep.subr.bf16.mxu0 0
    %473 = vmatpush1.bf16.msra.mxu0 %v371
    %474 = vmatprep.subr.bf16.mxu0 0
    %475 = vmatpush1.bf16.msra.mxu0 %v372
    %476 = vmatprep.subr.bf16.mxu0 0
    %477 = vmatpush1.bf16.msra.mxu0 %v373
    %478 = vmatprep.subr.bf16.mxu0 0
    %479 = vmatpush1.bf16.msra.mxu0 %v374
    %480 = vmatprep.subr.bf16.mxu0 0
    %481 = vmatpush1.bf16.msra.mxu0 %v375
    %482 = vmatprep.subr.bf16.mxu0 0
    %483 = vmatpush1.bf16.msra.mxu0 %v376
    %484 = vmatprep.subr.bf16.mxu0 0
    %485 = vmatpush1.bf16.msra.mxu0 %v377
    %486 = vmatprep.subr.bf16.mxu0 0
    %487 = vmatpush1.bf16.msra.mxu0 %v378
    %488 = vmatprep.subr.bf16.mxu0 0
    %489 = vmatpush1.bf16.msra.mxu0 %v379
    %490 = vmatprep.subr.bf16.mxu0 0
    %491 = vmatpush1.bf16.msra.mxu0 %v380
    %492 = vmatprep.subr.bf16.mxu0 0
    %493 = vmatpush1.bf16.msra.mxu0 %v381
    %494 = vmatprep.mubr.bf16.mxu0 %v158
    %495 = vmatmul.mubr.bf16.gmra.mrb[0].mxu0 %v144
    %v496 = vpop.f32.mrb[0].mxu0
    %v497 = vadd.f32 %v118, %v496
    %v498 = vpop.f32.mrb[0].mxu0
    %v499 = vpop.f32.mrb[0].mxu0
    %v500 = vpop.f32.mrb[0].mxu0
    %501 = vdwg.mxu0
    %502 = vmatprep.subr.bf16.mxu0 0
    %503 = vmatpush1.bf16.msra.mxu0 %v382
    %504 = vmatprep.subr.bf16.mxu0 0
    %505 = vmatpush1.bf16.msra.mxu0 %v383
    %506 = vmatprep.subr.bf16.mxu0 0
    %507 = vmatpush1.bf16.msra.mxu0 %v384
    %508 = vmatprep.subr.bf16.mxu0 0
    %509 = vmatpush1.bf16.msra.mxu0 %v385
    %510 = vmatprep.subr.bf16.mxu0 0
    %511 = vmatpush1.bf16.msra.mxu0 %v386
    %512 = vmatprep.subr.bf16.mxu0 0
    %513 = vmatpush1.bf16.msra.mxu0 %v387
    %514 = vmatprep.subr.bf16.mxu0 0
    %515 = vmatpush1.bf16.msra.mxu0 %v388
    %516 = vmatprep.subr.bf16.mxu0 0
    %517 = vmatpush1.bf16.msra.mxu0 %v389
    %518 = vmatprep.subr.bf16.mxu0 0
    %519 = vmatpush1.bf16.msra.mxu0 %v390
    %520 = vmatprep.subr.bf16.mxu0 0
    %521 = vmatpush1.bf16.msra.mxu0 %v391
    %522 = vmatprep.subr.bf16.mxu0 0
    %523 = vmatpush1.bf16.msra.mxu0 %v392
    %524 = vmatprep.subr.bf16.mxu0 0
    %525 = vmatpush1.bf16.msra.mxu0 %v393
    %526 = vmatprep.subr.bf16.mxu0 0
    %527 = vmatpush1.bf16.msra.mxu0 %v394
    %528 = vmatprep.subr.bf16.mxu0 0
    %529 = vmatpush1.bf16.msra.mxu0 %v395
    %530 = vmatprep.subr.bf16.mxu0 0
    %531 = vmatpush1.bf16.msra.mxu0 %v396
    %532 = vmatprep.subr.bf16.mxu0 0
    %533 = vmatpush1.bf16.msra.mxu0 %v397
    %534 = vmatprep.mubr.bf16.mxu0 %v167
    %535 = vmatmul.mubr.bf16.gmra.mrb[0].mxu0 %v166
    %v536 = vpop.f32.mrb[0].mxu0
    %v537 = vadd.f32 %v497, %v536
    %v538 = vpop.f32.mrb[0].mxu0
    %v539 = vpop.f32.mrb[0].mxu0
    %v540 = vpop.f32.mrb[0].mxu0
    %541 = vdwg.mxu0
    %542 = vmatprep.subr.bf16.mxu0 0
    %543 = vmatpush1.bf16.msra.mxu0 %v398
    %544 = vmatprep.subr.bf16.mxu0 0
    %545 = vmatpush1.bf16.msra.mxu0 %v399
    %546 = vmatprep.subr.bf16.mxu0 0
    %547 = vmatpush1.bf16.msra.mxu0 %v400
    %548 = vmatprep.subr.bf16.mxu0 0
    %549 = vmatpush1.bf16.msra.mxu0 %v401
    %550 = vmatprep.subr.bf16.mxu0 0
    %551 = vmatpush1.bf16.msra.mxu0 %v402
    %552 = vmatprep.subr.bf16.mxu0 0
    %553 = vmatpush1.bf16.msra.mxu0 %v403
    %554 = vmatprep.subr.bf16.mxu0 0
    %555 = vmatpush1.bf16.msra.mxu0 %v404
    %556 = vmatprep.subr.bf16.mxu0 0
    %557 = vmatpush1.bf16.msra.mxu0 %v405
    %558 = vmatprep.subr.bf16.mxu0 0
    %559 = vmatpush1.bf16.msra.mxu0 %v406
    %560 = vmatprep.subr.bf16.mxu0 0
    %561 = vmatpush1.bf16.msra.mxu0 %v407
    %562 = vmatprep.subr.bf16.mxu0 0
    %563 = vmatpush1.bf16.msra.mxu0 %v408
    %564 = vmatprep.subr.bf16.mxu0 0
    %565 = vmatpush1.bf16.msra.mxu0 %v409
    %566 = vmatprep.subr.bf16.mxu0 0
    %567 = vmatpush1.bf16.msra.mxu0 %v410
    %568 = vmatprep.subr.bf16.mxu0 0
    %569 = vmatpush1.bf16.msra.mxu0 %v411
    %570 = vmatprep.subr.bf16.mxu0 0
    %571 = vmatpush1.bf16.msra.mxu0 %v412
    %572 = vmatprep.subr.bf16.mxu0 0
    %573 = vmatpush1.bf16.msra.mxu0 %v413
    %574 = vmatprep.mubr.bf16.mxu0 %v165
    %575 = vmatmul.mubr.bf16.gmra.mrb[0].mxu0 %v151
    %v576 = vpop.f32.mrb[0].mxu0
    %v577 = vadd.f32 %v537, %v576
    %v578 = vpop.f32.mrb[0].mxu0
    %v579 = vpop.f32.mrb[0].mxu0
    %v580 = vpop.f32.mrb[0].mxu0
    %581 = vdwg.mxu0
    %vm582 = vcmask 25600
    %v583 = vsel %vm582, %v577, -inf
    %584 = vmax.xlane.f32.xlu0 %v583
    %v585 = vpop.xlane.xlu0 %584
    %v586 = vsub.f32 %v577, %v585
    %v587 = vmul.f32 %v586, 1.442695
    %v588 = vpow.pop %v587
    %v589 = vsel %vm582, %v588, 0.0
    %590 = vadd.xlane.f32.xlu0 %v589
    %v591 = vpop.xlane.xlu0 %590
    %v592 = vrcp.pop %v591
    %v593 = vmul.f32 %v588, %v592
    %594 = vst.msk [vmem:[#allocation2] sm:$0x3] %vm582, %v593
    // Predicated region
    $region14: #{tpu_custom_call.1} parent=1 // pred_check
      _
    $region15: #{tpu_custom_call.1} parent=1 // pred_check_branch
      %596 = sbr.rel (0) target = $region17
    $region16: #{tpu_custom_call.1} parent=1 // pred_region
      %s598 = ssub.s32 32, 32
      %599 = vsyncadd [#allocation3], %s598
      %s601 = sshll.u32 [#allocation2], 4
      %s602 = int_to_ptr.vmem [resolvable:$true] %s601
      %604 = dma.vmem_to_hbm [thread:$0]  %s602, 32, %s3, [#allocation3]
    $region17: #{tpu_custom_call.1} parent=1 // pred_fallthru
      _
    // Predicated region
    $region18: #{tpu_custom_call.1} parent=1 // pred_check
      _
    $region19: #{tpu_custom_call.1} parent=1 // pred_check_branch
      %606 = sbr.rel (0) target = $region21
    $region20: #{tpu_custom_call.1} parent=1 // pred_region
      %607 = dma.done [#allocation3], 32
    $region21: #{tpu_custom_call.1} parent=1 // pred_fallthru
      _
    %608 = vsyncpa [#allocation3], 1

</llo_original>
